<compile_context>
chip_gen: v6e
topology: v6e:2x2x1
jax: 0.10.0
libtpu: 0.0.40
codegen_flags: <defaults>
</compile_context>

<pallas_src>
import jax
import jax.numpy as jnp
from jax.experimental import pallas as pl
from jax.experimental.pallas import tpu as pltpu


def _cdiv(a, b):
    return -(-a // b)


def _round_up(a, m):
    return _cdiv(a, m) * m


# ----------------------------- Pallas kernel --------------------------------
def _make_mlp_kernel(n_hidden):
    """Fused (Linear -> ReLU)^n_hidden -> Linear on one row tile.

    refs = (x, w_0, b_0, ..., w_{n_hidden-1}, b_{n_hidden-1}, w_out, b_out, o).
    Weights are bf16 MXU operands; accumulation, bias add and ReLU stay f32.
    The output layer is pre-padded to a lane-dense multiple of 128 so the final
    store is an unmasked vst.
    """

    def kernel(*refs):
        x_ref, o_ref = refs[0], refs[-1]
        # In-kernel f32 -> bf16 cast of the activations (keeps the cast off the
        # wrapper/HBM path; it is VPU work hidden under the MXU).
        h = x_ref[...].astype(jnp.bfloat16)
        for l in range(n_hidden):
            w_ref, b_ref = refs[1 + 2 * l], refs[2 + 2 * l]
            a = jnp.dot(h, w_ref[...], preferred_element_type=jnp.float32)
            # Bias + ReLU on the f32 accumulator.
            h = jnp.maximum(a + b_ref[...], 0.0).astype(jnp.bfloat16)
            # TODO(synk): Dropout after each hidden ReLU is identity in eval mode.
        w_ref, b_ref = refs[1 + 2 * n_hidden], refs[2 + 2 * n_hidden]
        o = jnp.dot(h, w_ref[...], preferred_element_type=jnp.float32)
        o_ref[...] = (o + b_ref[...]).astype(o_ref.dtype)

    return kernel


# -------------------- one-time parameter prep (model load) -------------------
def prepare_params(params):
    """Hoisted off the per-call path (review item).

    params: list of (w [fan_in, fan_out], b [fan_out]) f32 pairs, hidden layers
    first, output layer last.  Returns bf16 weights, f32 [1, F] biases, with the
    output layer zero-padded along the logits axis to a multiple of 128 lanes.
    """
    hidden, (wout, bout) = params[:-1], params[-1]
    prepped = []
    for w, b in hidden:
        prepped.append((w.astype(jnp.bfloat16),
                        b.astype(jnp.float32).reshape(1, -1)))
    h_dim, n_logits = wout.shape
    l_pad = max(128, _round_up(n_logits, 128))
    wout_p = jnp.zeros((h_dim, l_pad), jnp.bfloat16).at[:, :n_logits].set(
        wout.astype(jnp.bfloat16))
    bout_p = jnp.zeros((1, l_pad), jnp.float32).at[0, :n_logits].set(
        bout.astype(jnp.float32))
    prepped.append((wout_p, bout_p))
    return prepped, n_logits


# ------------------------------- wrapper -------------------------------------
def mlp_classifier_forward(hidden_states, prepped_params, num_logits,
                           hidden_states_idx=-1, cls_token_idx=-1):
    """hidden_states: [num_blocks, B, S, D] f32; prepped_params from prepare_params()."""
    num_blocks, B, S, D = hidden_states.shape
    # hidden_states_idx / cls_token_idx must stay static Python ints; resolve
    # negatives here.  (Traced indices would need scalar prefetch instead.)
    hs_idx = int(hidden_states_idx) % num_blocks
    cls_idx = int(cls_token_idx) % S

    # Only the cls token of the selected block is classified, so gather those
    # rows before the kernel: a single cheap [B, D] slice — no pad, no cast —
    # and the full [B, S, D] block never flows through the MLP.
    # (Folding this gather into the x BlockSpec would need a size-1 block on
    #  the second-to-last (S) axis of the 4-D array, violating the TPU (8,128)
    #  block-shape rule, so the wrapper slice is kept.)
    x_cls = hidden_states[hs_idx, :, cls_idx, :]                   # [B, D] f32

    n_hidden = len(prepped_params) - 1
    l_pad = prepped_params[-1][0].shape[1]

    # ----- row tiling -----
    TM_MAX = 1024                      # sweep 512-2048; tiles stay far below VMEM
    M = B
    if M <= 16:
        tm = M                         # full-extent block: legal, no row padding
    else:
        # >= 2 grid steps so both v7x TensorCores get work; sublane-aligned tm.
        tm = min(TM_MAX, _round_up(_cdiv(M, 2), 8))
    grid = (_cdiv(M, tm),)             # ragged last block: OOB writes discarded

    flat_params = [a for pair in prepped_params for a in pair]

    in_specs = [pl.BlockSpec((tm, D), lambda i: (i, 0))]           # x rows (pipelined)
    for w, b in prepped_params:
        # Resident weights/biases (constant index_map -> fetched once).
        # TODO(synk): at production D/H (>16 MiB bf16 per weight) mark these
        # pipeline_mode=pl.Buffered(1) and tile the K axis for v7x's 64 MiB VMEM.
        in_specs.append(pl.BlockSpec(w.shape, lambda i: (0, 0)))
        in_specs.append(pl.BlockSpec(b.shape, lambda i: (0, 0)))
    out_spec = pl.BlockSpec((tm, l_pad), lambda i: (i, 0))

    # Right-sized VMEM budget: double-buffered x/out tiles + (double-buffered)
    # resident params + activation scratch, with 1.5x headroom; clamp to v7x's
    # 64 MiB physical VMEM.
    param_bytes = sum(int(a.size) * a.dtype.itemsize for a in flat_params)
    max_feat = max(int(w.shape[1]) for w, _ in prepped_params)
    tile_bytes = 2 * (tm * D * 4 + tm * l_pad * 4) + tm * max_feat * 8
    vmem_limit = int(min(max(1.5 * (tile_bytes + 2 * param_bytes),
                             8 * 1024 * 1024),
                         64 * 1024 * 1024))

    # Advisory cost estimate so XLA schedules the surrounding slice sensibly.
    flops = 2 * M * sum(int(w.shape[0]) * int(w.shape[1])
                        for w, _ in prepped_params)
    bytes_accessed = M * D * 4 + param_bytes + M * l_pad * 4
    cost = pl.CostEstimate(flops=flops, transcendentals=0,
                           bytes_accessed=bytes_accessed)

    logits_p = pl.pallas_call(
        _make_mlp_kernel(n_hidden),
        out_shape=jax.ShapeDtypeStruct((M, l_pad), jnp.float32),
        grid_spec=pltpu.PrefetchScalarGridSpec(
            num_scalar_prefetch=0,
            grid=grid,
            in_specs=in_specs,
            out_specs=out_spec),
        compiler_params=pltpu.CompilerParams(
            dimension_semantics=("parallel",),
            vmem_limit_bytes=vmem_limit),
        cost_estimate=cost,
    )(x_cls, *flat_params)

    return logits_p[:, :num_logits]                                # [B, num_logits]


# ------------------------- deterministic param init -------------------------
def init_linear(key, fan_in, fan_out, dtype=jnp.float32):
    """torch.nn.Linear-style init: U(-1/sqrt(fan_in), 1/sqrt(fan_in)).
    Weight stored transposed as [fan_in, fan_out] for the kernel."""
    kw, kb = jax.random.split(key)
    bound = float(fan_in) ** -0.5
    w = jax.random.uniform(kw, (fan_in, fan_out), dtype, -bound, bound)
    b = jax.random.uniform(kb, (fan_out,), dtype, -bound, bound)
    return w, b


def reference_forward(hidden_states, params, hidden_states_idx=-1, cls_token_idx=-1):
    """Pure-JAX f32 reference matching the PyTorch module (eval mode)."""
    x = hidden_states[hidden_states_idx]
    for w, b in params[:-1]:
        x = jnp.maximum(x @ w + b, 0.0)
    wout, bout = params[-1]
    logits = x @ wout + bout
    return logits[:, cls_token_idx]


# ----------------------------------- main ------------------------------------
if __name__ == "__main__":
    # Small config consistent with MLPClassifierConfig's structure:
    #   input_size=256, n_layers=1 (hidden = input_size // 2 = 128), num_logits=4
    B, S, D = 2, 8, 256
    L = 4
    N_LAYERS = 1
    NUM_BLOCKS = 3          # pretend the LLM exposed 3 hidden_states blocks

    key = jax.random.PRNGKey(0)
    keys = jax.random.split(key, 2 + N_LAYERS)

    hidden_states = jax.random.normal(keys[0], (NUM_BLOCKS, B, S, D), jnp.float32)

    # Params exactly as the PyTorch loop builds them: every hidden MLPBlock has
    # output size config.input_size // 2, then the output Linear.
    params = []
    in_size = D
    for l in range(N_LAYERS):
        out_size = D // 2
        params.append(init_linear(keys[1 + l], in_size, out_size))
        in_size = out_size
    params.append(init_linear(keys[-1], in_size, L))

    # One-time parameter prep (model-load time), off the per-call path.
    prepped, num_logits = prepare_params(params)

    out = mlp_classifier_forward(hidden_states, prepped, num_logits,
                                 hidden_states_idx=-1, cls_token_idx=-1)
    out = jax.block_until_ready(out)

    ref = reference_forward(hidden_states, params)
    assert out.shape == (B, L), out.shape
    # bf16 MXU operands with f32 accumulation -> small, bounded deviation vs f32.
    assert jnp.allclose(out, ref, atol=5e-2, rtol=5e-2), "mismatch vs reference"

    print("KERNEL_OK")
</pallas_src>

<mosaic_0001>
module attributes {stable_mosaic.version = 11 : i64} {
  func.func @kernel(%arg0: i32, %arg1: memref<2x256xf32, #tpu.memory_space<vmem>>, %arg2: memref<256x128xbf16, #tpu.memory_space<vmem>>, %arg3: memref<1x128xf32, #tpu.memory_space<vmem>>, %arg4: memref<128x128xbf16, #tpu.memory_space<vmem>>, %arg5: memref<1x128xf32, #tpu.memory_space<vmem>>, %arg6: memref<2x128xf32, #tpu.memory_space<vmem>>) attributes {dimension_semantics = [#tpu.dimension_semantics<parallel>], iteration_bounds = array<i64: 1>, scalar_prefetch = 0 : i64, scratch_operands = 0 : i64, tpu.core_type = #tpu.core_type<tc>, window_params = [{transform_indices = @transform_0, window_bounds = array<i64: 2, 256>}, {pipeline_mode = #tpu.pipeline_mode<synchronous>, transform_indices = @transform_1, window_bounds = array<i64: 256, 128>}, {pipeline_mode = #tpu.pipeline_mode<synchronous>, transform_indices = @transform_2, window_bounds = array<i64: 1, 128>}, {pipeline_mode = #tpu.pipeline_mode<synchronous>, transform_indices = @transform_3, window_bounds = array<i64: 128, 128>}, {pipeline_mode = #tpu.pipeline_mode<synchronous>, transform_indices = @transform_4, window_bounds = array<i64: 1, 128>}, {transform_indices = @transform_5, window_bounds = array<i64: 2, 128>}]} {
    %c0 = arith.constant 0 : index
    %c0_0 = arith.constant 0 : index
    %0 = vector.load %arg1[%c0, %c0_0] : memref<2x256xf32, #tpu.memory_space<vmem>>, vector<2x256xf32>
    %1 = arith.truncf %0 : vector<2x256xf32> to vector<2x256xbf16>
    %c0_1 = arith.constant 0 : index
    %c0_2 = arith.constant 0 : index
    %2 = vector.load %arg2[%c0_1, %c0_2] : memref<256x128xbf16, #tpu.memory_space<vmem>>, vector<256x128xbf16>
    %cst = arith.constant dense<0.000000e+00> : vector<2x128xf32>
    %3 = tpu.matmul %1, %2, %cst {dimension_numbers = #tpu.dot_dimension_numbers<[1], [0], [0], [1], [0, 0, 1, 1], [], []>} : vector<2x256xbf16>, vector<256x128xbf16>, vector<2x128xf32> -> vector<2x128xf32>
    %c0_3 = arith.constant 0 : index
    %c0_4 = arith.constant 0 : index
    %4 = vector.load %arg3[%c0_3, %c0_4] : memref<1x128xf32, #tpu.memory_space<vmem>>, vector<1x128xf32>
    %5 = vector.broadcast %4 : vector<1x128xf32> to vector<2x128xf32>
    %6 = arith.addf %3, %5 : vector<2x128xf32>
    %cst_5 = arith.constant 0.000000e+00 : f32
    %7 = vector.broadcast %cst_5 : f32 to vector<2x128xf32>
    %8 = arith.maximumf %6, %7 : vector<2x128xf32>
    %9 = arith.truncf %8 : vector<2x128xf32> to vector<2x128xbf16>
    %c0_6 = arith.constant 0 : index
    %c0_7 = arith.constant 0 : index
    %10 = vector.load %arg4[%c0_6, %c0_7] : memref<128x128xbf16, #tpu.memory_space<vmem>>, vector<128x128xbf16>
    %cst_8 = arith.constant dense<0.000000e+00> : vector<2x128xf32>
    %11 = tpu.matmul %9, %10, %cst_8 {dimension_numbers = #tpu.dot_dimension_numbers<[1], [0], [0], [1], [0, 0, 1, 1], [], []>} : vector<2x128xbf16>, vector<128x128xbf16>, vector<2x128xf32> -> vector<2x128xf32>
    %c0_9 = arith.constant 0 : index
    %c0_10 = arith.constant 0 : index
    %12 = vector.load %arg5[%c0_9, %c0_10] : memref<1x128xf32, #tpu.memory_space<vmem>>, vector<1x128xf32>
    %13 = vector.broadcast %12 : vector<1x128xf32> to vector<2x128xf32>
    %14 = arith.addf %11, %13 : vector<2x128xf32>
    %c0_11 = arith.constant 0 : index
    %c0_12 = arith.constant 0 : index
    %15 = vector.load %arg6[%c0_11, %c0_12] : memref<2x128xf32, #tpu.memory_space<vmem>>, vector<2x128xf32>
    tpu.vector_store %arg6[%c0_11, %c0_12], %14 {strides = array<i32>} : memref<2x128xf32, #tpu.memory_space<vmem>>, vector<2x128xf32>,
    return
  }
  func.func @transform_0(%arg0: i32) -> (i32, i32) {
    %c0_i32 = arith.constant 0 : i32
    %c0_i32_0 = arith.constant 0 : i32
    return %arg0, %c0_i32 : i32, i32
  }
  func.func @transform_1(%arg0: i32) -> (i32, i32) {
    %c0_i32 = arith.constant 0 : i32
    %c0_i32_0 = arith.constant 0 : i32
    %c0_i32_1 = arith.constant 0 : i32
    return %c0_i32, %c0_i32_0 : i32, i32
  }
  func.func @transform_2(%arg0: i32) -> (i32, i32) {
    %c0_i32 = arith.constant 0 : i32
    %c0_i32_0 = arith.constant 0 : i32
    %c0_i32_1 = arith.constant 0 : i32
    return %c0_i32, %c0_i32_0 : i32, i32
  }
  func.func @transform_3(%arg0: i32) -> (i32, i32) {
    %c0_i32 = arith.constant 0 : i32
    %c0_i32_0 = arith.constant 0 : i32
    %c0_i32_1 = arith.constant 0 : i32
    return %c0_i32, %c0_i32_0 : i32, i32
  }
  func.func @transform_4(%arg0: i32) -> (i32, i32) {
    %c0_i32 = arith.constant 0 : i32
    %c0_i32_0 = arith.constant 0 : i32
    %c0_i32_1 = arith.constant 0 : i32
    return %c0_i32, %c0_i32_0 : i32, i32
  }
  func.func @transform_5(%arg0: i32) -> (i32, i32) {
    %c0_i32 = arith.constant 0 : i32
    %c0_i32_0 = arith.constant 0 : i32
    return %arg0, %c0_i32 : i32, i32
  }
}

</mosaic_0001>

<llo_original>
// kernel: tpu_custom_call.1
$region0: #{tpu_custom_call.1}
  #allocation0 [shape = 'u32[]', space=smem, size = 0x4, offset = 0x4, fixed_abs, tag = 'smem constant byte address 0x4 - core index']
  #allocation1 [shape = 'u32[144,128]{1,0:T(1,128)}', space=vmem, size = 0x12000, scoped, tag = 'internal scratch']
  %s0 = inlined_call_operand.hbm [shape: f32[2,256], index: 0, kind: input, shape index: {}]
  %s1 = inlined_call_operand.hbm [shape: bf16[256,128], index: 1, kind: input, shape index: {}]
  %s2 = inlined_call_operand.vmem [shape: f32[1,128], index: 2, kind: input, shape index: {}]
  %s3 = inlined_call_operand.hbm [shape: bf16[128,128], index: 3, kind: input, shape index: {}]
  %s4 = inlined_call_operand.vmem [shape: f32[1,128], index: 4, kind: input, shape index: {}]
  %s5 = inlined_call_operand.hbm [shape: f32[2,128], index: 5, kind: output, shape index: {}]
  %s6 = sld [smem:[#allocation0]]
  $region42: #{tpu_custom_call.1} parent=0
    _
  %s8 = ssub.s32 1, %s6
  %s9 = scalar_select 0, %s8, %s6
  $region1: #{tpu_custom_call.1} parent=0
    #allocation2 [shape = 'u8[2048]{0}', space=vmem, size = 0x800, scoped, tag = 'input window, operand 0, single buffered']
    #allocation3 [shape = 's32[1]{0}', space=sflag, size = 0x4, scoped, tag = 'scoped memory for tpu_custom_call.1']
    #allocation4 [shape = 's32[1]{0}', space=sflag, size = 0x4, scoped, tag = 'scoped memory for tpu_custom_call.1']
    #allocation5 [shape = 'u8[65536]{0}', space=vmem, size = 0x10000, scoped, tag = 'input window, operand 1, single buffered']
    #allocation6 [shape = 's32[1]{0}', space=sflag, size = 0x4, scoped, tag = 'scoped memory for tpu_custom_call.1']
    #allocation7 [shape = 'u8[32768]{0}', space=vmem, size = 0x8000, scoped, tag = 'input window, operand 3, single buffered']
    #allocation8 [shape = 'u8[1024]{0}', space=vmem, size = 0x400, scoped, tag = 'output window, operand 0, single buffered']
    %10 = vsyncpa [#allocation3], 0
    %11 = vsyncpa [#allocation6], 0
    %12 = vsyncpa [#allocation4], 0
    // Predicated region
    $region2: #{tpu_custom_call.1} parent=1 // pred_check
      _
    $region3: #{tpu_custom_call.1} parent=1 // pred_check_branch
      %14 = sbr.rel (0) target = $region5
    $region4: #{tpu_custom_call.1} parent=1 // pred_region
      %s16 = ssub.s32 64, 64
      %17 = vsyncadd [#allocation3], %s16
      %s19 = sshll.u32 [#allocation2], 4
      %s20 = int_to_ptr.vmem [resolvable:$true] %s19
      %22 = dma.hbm_to_vmem [thread:$0]  %s0, 64, %s20, [#allocation3]
    $region5: #{tpu_custom_call.1} parent=1 // pred_fallthru
      _
    // Predicated region
    $region6: #{tpu_custom_call.1} parent=1 // pred_check
      _
    $region7: #{tpu_custom_call.1} parent=1 // pred_check_branch
      %24 = sbr.rel (0) target = $region9
    $region8: #{tpu_custom_call.1} parent=1 // pred_region
      %s26 = ssub.s32 2048, 2048
      %27 = vsyncadd [#allocation6], %s26
      %s28 = sshll.u32 [#allocation5], 4
      %s29 = int_to_ptr.vmem [resolvable:$true] %s28
      %34 = dma.hbm_to_vmem [thread:$0]  %s1, 2048, %s29, [#allocation6], 64, 64, 4
    $region9: #{tpu_custom_call.1} parent=1 // pred_fallthru
      _
    // Predicated region
    $region10: #{tpu_custom_call.1} parent=1 // pred_check
      _
    $region11: #{tpu_custom_call.1} parent=1 // pred_check_branch
      %36 = sbr.rel (0) target = $region13
    $region12: #{tpu_custom_call.1} parent=1 // pred_region
      _
    $region13: #{tpu_custom_call.1} parent=1 // pred_fallthru
      _
    // Predicated region
    $region14: #{tpu_custom_call.1} parent=1 // pred_check
      _
    $region15: #{tpu_custom_call.1} parent=1 // pred_check_branch
      %38 = sbr.rel (0) target = $region17
    $region16: #{tpu_custom_call.1} parent=1 // pred_region
      %s40 = ssub.s32 1024, 1024
      %41 = vsyncadd [#allocation6], %s40
      %s42 = sshll.u32 [#allocation7], 4
      %s43 = int_to_ptr.vmem [resolvable:$true] %s42
      %48 = dma.hbm_to_vmem [thread:$0]  %s3, 1024, %s43, [#allocation6], 64, 64, 4
    $region17: #{tpu_custom_call.1} parent=1 // pred_fallthru
      _
    // Predicated region
    $region18: #{tpu_custom_call.1} parent=1 // pred_check
      _
    $region19: #{tpu_custom_call.1} parent=1 // pred_check_branch
      %50 = sbr.rel (0) target = $region21
    $region20: #{tpu_custom_call.1} parent=1 // pred_region
      _
    $region21: #{tpu_custom_call.1} parent=1 // pred_fallthru
      _
    // Predicated region
    $region22: #{tpu_custom_call.1} parent=1 // pred_check
      _
    $region23: #{tpu_custom_call.1} parent=1 // pred_check_branch
      %52 = sbr.rel (0) target = $region25
    $region24: #{tpu_custom_call.1} parent=1 // pred_region
      %53 = dma.done [#allocation3], 64
    $region25: #{tpu_custom_call.1} parent=1 // pred_fallthru
      _
    // Predicated region
    $region26: #{tpu_custom_call.1} parent=1 // pred_check
      _
    $region27: #{tpu_custom_call.1} parent=1 // pred_check_branch
      %55 = sbr.rel (0) target = $region29
    $region28: #{tpu_custom_call.1} parent=1 // pred_region
      %56 = dma.done [#allocation6], 2048
    $region29: #{tpu_custom_call.1} parent=1 // pred_fallthru
      _
    // Predicated region
    $region30: #{tpu_custom_call.1} parent=1 // pred_check
      _
    $region31: #{tpu_custom_call.1} parent=1 // pred_check_branch
      %58 = sbr.rel (0) target = $region33
    $region32: #{tpu_custom_call.1} parent=1 // pred_region
      %59 = dma.done [#allocation6], 1024
    $region33: #{tpu_custom_call.1} parent=1 // pred_fallthru
      _
    %v61 = vld [vmem:[#allocation2] sm:$0xf]
    %v64 = vunpack.c.l.s4 1983009808
    %v65 = vunpack.c.0.s8 %v64
    %v66 = vlaneseq
    %v67 = vshrl.u32 %v66, 7
    %v68 = vsub.s32 %v65, %v67
    %v69 = vrot.slane %v61, %v68
    %v70 = vcombine.high %v69, %v69
    %v73 = vpack.c.bf16 %v69, %v69
    %v74 = vpack.c.bf16 %v70, %v70
    %v75 = vld [vmem:[#allocation5] sm:$0xf]
    %v76 = vld [vmem:[#allocation5 + $0x4] sm:$0xf]
    %v77 = vld [vmem:[#allocation5 + $0x8] sm:$0xf]
    %v78 = vld [vmem:[#allocation5 + $0xc] sm:$0xf]
    %v79 = vld [vmem:[#allocation5 + $0x10] sm:$0xf]
    %v80 = vld [vmem:[#allocation5 + $0x14] sm:$0xf]
    %v81 = vld [vmem:[#allocation5 + $0x18] sm:$0xf]
    %v82 = vld [vmem:[#allocation5 + $0x1c] sm:$0xf]
    %v83 = vld [vmem:[#allocation5 + $0x20] sm:$0xf]
    %v84 = vld [vmem:[#allocation5 + $0x24] sm:$0xf]
    %v85 = vld [vmem:[#allocation5 + $0x28] sm:$0xf]
    %v86 = vld [vmem:[#allocation5 + $0x2c] sm:$0xf]
    %v87 = vld [vmem:[#allocation5 + $0x30] sm:$0xf]
    %v88 = vld [vmem:[#allocation5 + $0x34] sm:$0xf]
    %v89 = vld [vmem:[#allocation5 + $0x38] sm:$0xf]
    %v90 = vld [vmem:[#allocation5 + $0x3c] sm:$0xf]
    %v91 = vld [vmem:[#allocation5 + $0x40] sm:$0xf]
    %v92 = vld [vmem:[#allocation5 + $0x44] sm:$0xf]
    %v93 = vld [vmem:[#allocation5 + $0x48] sm:$0xf]
    %v94 = vld [vmem:[#allocation5 + $0x4c] sm:$0xf]
    %v95 = vld [vmem:[#allocation5 + $0x50] sm:$0xf]
    %v96 = vld [vmem:[#allocation5 + $0x54] sm:$0xf]
    %v97 = vld [vmem:[#allocation5 + $0x58] sm:$0xf]
    %v98 = vld [vmem:[#allocation5 + $0x5c] sm:$0xf]
    %v99 = vld [vmem:[#allocation5 + $0x60] sm:$0xf]
    %v100 = vld [vmem:[#allocation5 + $0x64] sm:$0xf]
    %v101 = vld [vmem:[#allocation5 + $0x68] sm:$0xf]
    %v102 = vld [vmem:[#allocation5 + $0x6c] sm:$0xf]
    %v103 = vld [vmem:[#allocation5 + $0x70] sm:$0xf]
    %v104 = vld [vmem:[#allocation5 + $0x74] sm:$0xf]
    %v105 = vld [vmem:[#allocation5 + $0x78] sm:$0xf]
    %v106 = vld [vmem:[#allocation5 + $0x7c] sm:$0xf]
    %v107 = vld [vmem:[%s2] sm:$0x1]
    %v109 = vlaneseq
    %v110 = vshrl.u32 %v109, 7
    %v111 = vsub.s32 0, %v110
    %v112 = vrot.slane %v107, %v111
    %v146 = vunpack.c.l.b16 %v75
    %v147 = vunpack.c.l.b16 %v76
    %v148 = vunpack.c.l.b16 %v77
    %v149 = vunpack.c.l.b16 %v78
    %v150 = vunpack.c.l.b16 %v79
    %v151 = vunpack.c.l.b16 %v80
    %v152 = vunpack.c.l.b16 %v81
    %v153 = vunpack.c.l.b16 %v82
    %v154 = vunpack.c.l.b16 %v83
    %v155 = vunpack.c.l.b16 %v84
    %v156 = vunpack.c.l.b16 %v85
    %v157 = vunpack.c.l.b16 %v86
    %v158 = vunpack.c.l.b16 %v87
    %v159 = vunpack.c.l.b16 %v88
    %v160 = vunpack.c.l.b16 %v89
    %v161 = vunpack.c.l.b16 %v90
    %v162 = vunpack.c.l.b16 %v91
    %v163 = vunpack.c.l.b16 %v92
    %v164 = vunpack.c.l.b16 %v93
    %v165 = vunpack.c.l.b16 %v94
    %v166 = vunpack.c.l.b16 %v95
    %v167 = vunpack.c.l.b16 %v96
    %v168 = vunpack.c.l.b16 %v97
    %v169 = vunpack.c.l.b16 %v98
    %v170 = vunpack.c.l.b16 %v99
    %v171 = vunpack.c.l.b16 %v100
    %v172 = vunpack.c.l.b16 %v101
    %v173 = vunpack.c.l.b16 %v102
    %v174 = vunpack.c.l.b16 %v103
    %v175 = vunpack.c.l.b16 %v104
    %v176 = vunpack.c.l.b16 %v105
    %v177 = vunpack.c.l.b16 %v106
    %v178 = vpack.c.b16 %v147, %v146
    %v179 = vpack.c.b16 %v149, %v148
    %v180 = vpack.c.b16 %v151, %v150
    %v181 = vpack.c.b16 %v153, %v152
    %v182 = vpack.c.b16 %v155, %v154
    %v183 = vpack.c.b16 %v157, %v156
    %v184 = vpack.c.b16 %v159, %v158
    %v185 = vpack.c.b16 %v161, %v160
    %v186 = vpack.c.b16 %v163, %v162
    %v187 = vpack.c.b16 %v165, %v164
    %v188 = vpack.c.b16 %v167, %v166
    %v189 = vpack.c.b16 %v169, %v168
    %v190 = vpack.c.b16 %v171, %v170
    %v191 = vpack.c.b16 %v173, %v172
    %v192 = vpack.c.b16 %v175, %v174
    %v193 = vpack.c.b16 %v177, %v176
    %210 = vmatprep.subr.bf16.mxu0 0
    %211 = vmatpush1.bf16.msra.mxu0 %v185
    %212 = vmatprep.subr.bf16.mxu0 0
    %213 = vmatpush1.bf16.msra.mxu0 %v184
    %214 = vmatprep.subr.bf16.mxu0 0
    %215 = vmatpush1.bf16.msra.mxu0 %v183
    %216 = vmatprep.subr.bf16.mxu0 0
    %217 = vmatpush1.bf16.msra.mxu0 %v182
    %218 = vmatprep.subr.bf16.mxu0 0
    %219 = vmatpush1.bf16.msra.mxu0 %v181
    %220 = vmatprep.subr.bf16.mxu0 0
    %221 = vmatpush1.bf16.msra.mxu0 %v180
    %222 = vmatprep.subr.bf16.mxu0 0
    %223 = vmatpush1.bf16.msra.mxu0 %v179
    %224 = vmatprep.subr.bf16.mxu0 0
    %225 = vmatpush1.bf16.msra.mxu0 %v178
    %226 = vmatprep.subr.bf16.mxu0 0
    %227 = vmatpush2.bf16.msra.mxu0 %v193
    %228 = vmatprep.subr.bf16.mxu0 0
    %229 = vmatpush2.bf16.msra.mxu0 %v192
    %230 = vmatprep.subr.bf16.mxu0 0
    %231 = vmatpush2.bf16.msra.mxu0 %v191
    %232 = vmatprep.subr.bf16.mxu0 0
    %233 = vmatpush2.bf16.msra.mxu0 %v190
    %234 = vmatprep.subr.bf16.mxu0 0
    %235 = vmatpush2.bf16.msra.mxu0 %v189
    %236 = vmatprep.subr.bf16.mxu0 0
    %237 = vmatpush2.bf16.msra.mxu0 %v188
    %238 = vmatprep.subr.bf16.mxu0 0
    %239 = vmatpush2.bf16.msra.mxu0 %v187
    %240 = vmatprep.subr.bf16.mxu0 0
    %241 = vmatpush2.bf16.msra.mxu0 %v186
    %242 = vmatprep.mubr.bf16.mxu0 %v74
    %243 = vmatmul.mubr.bf16.gmra.mxu0 %v73
    %v244 = vpop.f32.mrf.mxu0
    %v245 = vadd.f32 %v112, %v244
    %v246 = vpop.f32.mrf.mxu0
    %v247 = vpop.f32.mrf.mxu0
    %v248 = vpop.f32.mrf.mxu0
    %249 = vdwg.mxu0
    %v250 = vmax.f32 %v245, 0.0
    %v251 = vpack.c.bf16 %v250, %v250
    %v252 = vld [vmem:[#allocation7] sm:$0xf]
    %v253 = vld [vmem:[#allocation7 + $0x4] sm:$0xf]
    %v254 = vld [vmem:[#allocation7 + $0x8] sm:$0xf]
    %v255 = vld [vmem:[#allocation7 + $0xc] sm:$0xf]
    %v256 = vld [vmem:[#allocation7 + $0x10] sm:$0xf]
    %v257 = vld [vmem:[#allocation7 + $0x14] sm:$0xf]
    %v258 = vld [vmem:[#allocation7 + $0x18] sm:$0xf]
    %v259 = vld [vmem:[#allocation7 + $0x1c] sm:$0xf]
    %v260 = vld [vmem:[#allocation7 + $0x20] sm:$0xf]
    %v261 = vld [vmem:[#allocation7 + $0x24] sm:$0xf]
    %v262 = vld [vmem:[#allocation7 + $0x28] sm:$0xf]
    %v263 = vld [vmem:[#allocation7 + $0x2c] sm:$0xf]
    %v264 = vld [vmem:[#allocation7 + $0x30] sm:$0xf]
    %v265 = vld [vmem:[#allocation7 + $0x34] sm:$0xf]
    %v266 = vld [vmem:[#allocation7 + $0x38] sm:$0xf]
    %v267 = vld [vmem:[#allocation7 + $0x3c] sm:$0xf]
    %v268 = vld [vmem:[%s4] sm:$0x1]
    %v270 = vlaneseq
    %v271 = vshrl.u32 %v270, 7
    %v272 = vsub.s32 0, %v271
    %v273 = vrot.slane %v268, %v272
    %v291 = vunpack.c.l.b16 %v252
    %v292 = vunpack.c.l.b16 %v253
    %v293 = vunpack.c.l.b16 %v254
    %v294 = vunpack.c.l.b16 %v255
    %v295 = vunpack.c.l.b16 %v256
    %v296 = vunpack.c.l.b16 %v257
    %v297 = vunpack.c.l.b16 %v258
    %v298 = vunpack.c.l.b16 %v259
    %v299 = vunpack.c.l.b16 %v260
    %v300 = vunpack.c.l.b16 %v261
    %v301 = vunpack.c.l.b16 %v262
    %v302 = vunpack.c.l.b16 %v263
    %v303 = vunpack.c.l.b16 %v264
    %v304 = vunpack.c.l.b16 %v265
    %v305 = vunpack.c.l.b16 %v266
    %v306 = vunpack.c.l.b16 %v267
    %v307 = vpack.c.b16 %v292, %v291
    %v308 = vpack.c.b16 %v294, %v293
    %v309 = vpack.c.b16 %v296, %v295
    %v310 = vpack.c.b16 %v298, %v297
    %v311 = vpack.c.b16 %v300, %v299
    %v312 = vpack.c.b16 %v302, %v301
    %v313 = vpack.c.b16 %v304, %v303
    %v314 = vpack.c.b16 %v306, %v305
    %323 = vmatprep.subr.bf16.mxu0 0
    %324 = vmatpush1.bf16.msra.mxu0 %v314
    %325 = vmatprep.subr.bf16.mxu0 0
    %326 = vmatpush1.bf16.msra.mxu0 %v313
    %327 = vmatprep.subr.bf16.mxu0 0
    %328 = vmatpush1.bf16.msra.mxu0 %v312
    %329 = vmatprep.subr.bf16.mxu0 0
    %330 = vmatpush1.bf16.msra.mxu0 %v311
    %331 = vmatprep.subr.bf16.mxu0 0
    %332 = vmatpush1.bf16.msra.mxu0 %v310
    %333 = vmatprep.subr.bf16.mxu0 0
    %334 = vmatpush1.bf16.msra.mxu0 %v309
    %335 = vmatprep.subr.bf16.mxu0 0
    %336 = vmatpush1.bf16.msra.mxu0 %v308
    %337 = vmatprep.subr.bf16.mxu0 0
    %338 = vmatpush1.bf16.msra.mxu0 %v307
    %339 = vmatprep.subr.bf16.mxu0 0
    %340 = vmatpush2.bf16.msra.mxu0 0
    %341 = vmatprep.subr.bf16.mxu0 0
    %342 = vmatpush2.bf16.msra.mxu0 0
    %343 = vmatprep.subr.bf16.mxu0 0
    %344 = vmatpush2.bf16.msra.mxu0 0
    %345 = vmatprep.subr.bf16.mxu0 0
    %346 = vmatpush2.bf16.msra.mxu0 0
    %347 = vmatprep.subr.bf16.mxu0 0
    %348 = vmatpush2.bf16.msra.mxu0 0
    %349 = vmatprep.subr.bf16.mxu0 0
    %350 = vmatpush2.bf16.msra.mxu0 0
    %351 = vmatprep.subr.bf16.mxu0 0
    %352 = vmatpush2.bf16.msra.mxu0 0
    %353 = vmatprep.subr.bf16.mxu0 0
    %354 = vmatpush2.bf16.msra.mxu0 0
    %355 = vmatprep.mubr.bf16.mxu0 0
    %356 = vmatmul.mubr.bf16.gmra.mxu0 %v251
    %v357 = vpop.f32.mrf.mxu0
    %v358 = vadd.f32 %v273, %v357
    %v359 = vpop.f32.mrf.mxu0
    %v360 = vpop.f32.mrf.mxu0
    %v361 = vpop.f32.mrf.mxu0
    %362 = vdwg.mxu0
    %363 = vst [vmem:[#allocation8] sm:$0x3] %v358
    // Predicated region
    $region34: #{tpu_custom_call.1} parent=1 // pred_check
      _
    $region35: #{tpu_custom_call.1} parent=1 // pred_check_branch
      %365 = sbr.rel (0) target = $region37
    $region36: #{tpu_custom_call.1} parent=1 // pred_region
      %s367 = ssub.s32 32, 32
      %368 = vsyncadd [#allocation4], %s367
      %s370 = sshll.u32 [#allocation8], 4
      %s371 = int_to_ptr.vmem [resolvable:$true] %s370
      %373 = dma.vmem_to_hbm [thread:$0]  %s371, 32, %s5, [#allocation4]
    $region37: #{tpu_custom_call.1} parent=1 // pred_fallthru
      _
    // Predicated region
    $region38: #{tpu_custom_call.1} parent=1 // pred_check
      _
    $region39: #{tpu_custom_call.1} parent=1 // pred_check_branch
      %375 = sbr.rel (0) target = $region41
    $region40: #{tpu_custom_call.1} parent=1 // pred_region
      %376 = dma.done [#allocation4], 32
    $region41: #{tpu_custom_call.1} parent=1 // pred_fallthru
      _
    %377 = vsyncpa [#allocation3], 1
    %378 = vsyncpa [#allocation6], 1
    %379 = vsyncpa [#allocation4], 1

</llo_original>
